<compile_context>
chip_gen: v7x
topology: tpu7x:2x2x1
jax: 0.10.0
libtpu: 0.0.40
codegen_flags: <defaults>
</compile_context>

<pallas_src>
import functools

import jax
import jax.numpy as jnp
from jax import lax
from jax.experimental import pallas as pl
from jax.experimental.pallas import tpu as pltpu


_LANE = 128
_F32_COPIES = 4                       # conservative live f32 full-tile intermediates
_ROW_FIXED_BYTES = 2 * 512 + 3 * 512  # labels block (x2 bufs) + m/l/p scratch (lane-padded)


def _round_up(x, m):
    return (x + m - 1) // m * m


def _cdiv(a, b):
    return -(-a // b)


def _vmem_capacity_bytes():
    """Generation-aware VMEM capacity (falls back to v7x's 64 MiB = safe floor)."""
    try:
        cap = getattr(pltpu.get_tpu_info(), "vmem_capacity_bytes", None)
        if cap:
            return int(cap)
    except Exception:
        pass
    return 64 << 20


def _choose_tiles(n, c, itemsize, sub, budget, tile_rows=None, chunk_c=None):
    """Pick (tile_rows, num_row_tiles, chunk_c, num_chunks) against a VMEM budget."""
    c_pad = _round_up(c, _LANE)
    # Per streamed column: double-buffered native logits + f32 intermediates.
    per_col = 2 * itemsize + _F32_COPIES * 4

    def rows_for(cc_pad):
        return max(sub, budget // (cc_pad * per_col + _ROW_FIXED_BYTES))

    # ---- class-chunk size ----------------------------------------------------
    if chunk_c is not None:
        cc = int(chunk_c)
        cc = c if cc >= c else max(_LANE, _round_up(cc, _LANE))  # partial blocks lane-aligned
    elif rows_for(c_pad) >= 256 or c_pad <= 2048:
        cc = c                                   # whole class dim in one chunk
    else:
        # Chunk C so that ~512 rows still fit the budget (keeps per-step DMA large
        # and the f32 working set to one chunk).
        cc = (budget // 512 - _ROW_FIXED_BYTES) // per_col
        cc = max(_LANE, cc // _LANE * _LANE)
        cc = min(cc, c_pad)
        if cc >= c:
            cc = c
    cc_pad = _round_up(cc, _LANE)
    num_chunks = _cdiv(c, cc)

    # ---- row-tile size (no artificial cap; budget-limited) --------------------
    if tile_rows is not None:
        tm = max(sub, _round_up(int(tile_rows), sub))
    else:
        tm = rows_for(cc_pad)
        tm = max(sub, tm // sub * sub)
        tm = min(tm, _round_up(n, sub))
        # v7x megacore: prefer an even count of >=2 row tiles so both
        # TensorCores' EUPs share the exp work (no-op on single-TC v5e/v6e).
        nt = _cdiv(n, tm)
        if nt == 1 and n >= 2048:
            nt = 2
        elif nt > 1 and nt % 2 == 1:
            nt += 1
        tm = max(sub, _round_up(_cdiv(n, nt), sub))
    tm = min(tm, _round_up(n, sub))
    num_tiles = _cdiv(n, tm)
    return tm, num_tiles, cc, num_chunks


def _ce_online_kernel(logits_ref, labels_ref, out_ref, m_ref, l_ref, p_ref, *,
                      tile_rows, chunk_c, n_rows, n_classes, mask_rows, mask_cols):
    """Online (flash-style) cross-entropy over one (row-tile, class-chunk) step."""
    i = pl.program_id(0)
    j = pl.program_id(1)

    @pl.when(j == 0)
    def _init():
        m_ref[...] = jnp.full_like(m_ref, -1e30)   # finite sentinel: no inf-inf NaN
        l_ref[...] = jnp.zeros_like(l_ref)
        p_ref[...] = jnp.zeros_like(p_ref)

    x = logits_ref[...].astype(jnp.float32)        # (TM, CC), cast in VMEM
    lbl = labels_ref[...]                          # (TM, 1) int32

    # Chunk-local column ids (avoids an extra full-tile add of j*chunk_c).
    col = lax.broadcasted_iota(jnp.int32, x.shape, 1)

    if mask_cols:
        col_ok = col < (n_classes - j * chunk_c)
        hit = (col == (lbl - j * chunk_c)) & col_ok
        # Padded columns -> very negative (drop out of max/sumexp), finite.
        x = jnp.where(col_ok, x, jnp.float32(-1e30))
    else:
        hit = col == (lbl - j * chunk_c)

    if mask_rows:
        row = lax.broadcasted_iota(jnp.int32, (tile_rows, 1), 0)
        row_ok = row < (n_rows - i * tile_rows)
        # Padded rows -> 0.0 (finite, benign); their per-row loss is dropped below.
        x = jnp.where(row_ok, x, jnp.float32(0.0))

    # Label pick on *raw* logits (row max folded back at finalize); the label
    # column lands in exactly one class chunk, so a plain sum accumulates it.
    p_ref[...] += jnp.sum(jnp.where(hit, x, 0.0), axis=-1, keepdims=True)

    # Online logsumexp update (running max + rescaled running sum of exps).
    m_prev = m_ref[...]
    m_new = jnp.maximum(m_prev, jnp.max(x, axis=-1, keepdims=True))
    l_ref[...] = (jnp.exp(m_prev - m_new) * l_ref[...]
                  + jnp.sum(jnp.exp(x - m_new), axis=-1, keepdims=True))
    m_ref[...] = m_new

    @pl.when(j == pl.num_programs(1) - 1)
    def _finalize():
        # per-row CE = logsumexp - x[label] = m + log(l) - picked
        per_row = jnp.log(l_ref[...]) + m_ref[...] - p_ref[...]
        if mask_rows:
            row = lax.broadcasted_iota(jnp.int32, (tile_rows, 1), 0)
            per_row = jnp.where(row < (n_rows - i * tile_rows), per_row, 0.0)
        out_ref[0, 0] = jnp.sum(per_row)


def node_loss(logits, labels, *, tile_rows=None, chunk_c=None):
    """JAX/Pallas equivalent of NodeLoss.forward(logit, label) -> scalar f32."""
    logits = jnp.asarray(logits)
    labels = jnp.asarray(labels).astype(jnp.int32)
    n, c = logits.shape
    itemsize = jnp.dtype(logits.dtype).itemsize
    sub = {4: 8, 2: 16, 1: 32}.get(itemsize, 8)   # sublane multiple for streamed dtype

    cap = _vmem_capacity_bytes()
    budget = int(cap * 0.40)       # tile-sizing budget (incl. f32 intermediates)
    vmem_limit = int(cap * 0.75)   # hard Mosaic limit, generation-aware

    tm, num_tiles, cc, num_chunks = _choose_tiles(
        n, c, itemsize, sub, budget, tile_rows=tile_rows, chunk_c=chunk_c)

    kernel = functools.partial(
        _ce_online_kernel,
        tile_rows=tm, chunk_c=cc, n_rows=n, n_classes=c,
        mask_rows=(n % tm) != 0, mask_cols=(c % cc) != 0)

    cost = pl.CostEstimate(
        flops=8 * n * c,
        transcendentals=n * c + 3 * n,
        bytes_accessed=n * c * itemsize + n * 4 + num_tiles * 4,
    )

    partials = pl.pallas_call(
        kernel,
        out_shape=jax.ShapeDtypeStruct((num_tiles, 1), jnp.float32),
        grid=(num_tiles, num_chunks),                       # reduction (chunk) axis last
        in_specs=[
            # Logits streamed in native dtype; f32 cast happens inside VMEM.
            pl.BlockSpec((tm, cc), lambda i, j: (i, j)),
            # Labels: block index constant along the chunk axis -> fetched once
            # per row tile.  TODO(synk): lane-dense (1, tm) or SMEM-prefetched
            # labels would remove the 128-lane padding of this block.
            pl.BlockSpec((tm, 1), lambda i, j: (i, 0)),
        ],
        # One scalar partial per row tile; same block across the chunk axis.
        out_specs=pl.BlockSpec((1, 1), lambda i, j: (i, 0),
                               memory_space=pltpu.MemorySpace.SMEM),
        scratch_shapes=[pltpu.VMEM((tm, 1), jnp.float32)] * 3,   # m, l, picked
        compiler_params=pltpu.CompilerParams(
            dimension_semantics=("parallel", "arbitrary"),
            vmem_limit_bytes=vmem_limit,
        ),
        cost_estimate=cost,
    )(logits, labels.reshape(n, 1))

    # Tiny tree reduction of per-tile partials outside the kernel.
    return jnp.sum(partials) / jnp.float32(n)


def _reference(logits, labels):
    logits = jnp.asarray(logits, jnp.float32)
    labels = jnp.asarray(labels, jnp.int32)
    logp = jax.nn.log_softmax(logits, axis=-1)
    nll = -jnp.take_along_axis(logp, labels[:, None], axis=-1)[:, 0]
    return jnp.mean(nll)


if __name__ == "__main__":
    key = jax.random.PRNGKey(0)
    k1, k2, k3, k4 = jax.random.split(key, 4)

    # Case 1: small demo shape (N=40 nodes, C=16 classes), auto tiling.
    n1, c1 = 40, 16
    logits1 = jax.random.normal(k1, (n1, c1), dtype=jnp.float32)
    labels1 = jax.random.randint(k2, (n1,), 0, c1, dtype=jnp.int32)
    ref1 = _reference(logits1, labels1)
    out1 = node_loss(logits1, labels1)
    jax.block_until_ready(out1)
    assert jnp.allclose(out1, ref1, atol=1e-5, rtol=1e-5), (out1, ref1)

    # Case 2: forced small row tile -> multi-row-tile parallel grid + row tail mask.
    out2 = node_loss(logits1, labels1, tile_rows=16)
    jax.block_until_ready(out2)
    assert jnp.allclose(out2, ref1, atol=1e-5, rtol=1e-5), (out2, ref1)

    # Case 3: class-chunked online-logsumexp path with a ragged class tail.
    n3, c3 = 48, 200
    logits3 = jax.random.normal(k3, (n3, c3), dtype=jnp.float32)
    labels3 = jax.random.randint(k4, (n3,), 0, c3, dtype=jnp.int32)
    ref3 = _reference(logits3, labels3)
    out3 = node_loss(logits3, labels3, chunk_c=128)
    jax.block_until_ready(out3)
    assert jnp.allclose(out3, ref3, atol=1e-5, rtol=1e-5), (out3, ref3)

    # Case 4: bf16 logits streamed natively, cast to f32 inside the kernel.
    logits_bf16 = logits1.astype(jnp.bfloat16)
    out4 = node_loss(logits_bf16, labels1)
    jax.block_until_ready(out4)
    ref4 = _reference(logits_bf16.astype(jnp.float32), labels1)
    assert jnp.allclose(out4, ref4, atol=1e-3, rtol=1e-3), (out4, ref4)

    print("KERNEL_OK")
</pallas_src>

<mosaic_0001>
module attributes {stable_mosaic.version = 11 : i64} {
  func.func @_ce_online_kernel(%arg0: i32, %arg1: i32, %arg2: memref<40x16xf32, #tpu.memory_space<vmem>>, %arg3: memref<40x1xi32, #tpu.memory_space<vmem>>, %arg4: memref<1x1xf32, #tpu.memory_space<smem>>, %arg5: memref<40x1xf32, #tpu.memory_space<vmem>>, %arg6: memref<40x1xf32, #tpu.memory_space<vmem>>, %arg7: memref<40x1xf32, #tpu.memory_space<vmem>>) attributes {dimension_semantics = [#tpu.dimension_semantics<parallel>, #tpu.dimension_semantics<arbitrary>], iteration_bounds = array<i64: 1, 1>, scalar_prefetch = 0 : i64, scratch_operands = 3 : i64, tpu.core_type = #tpu.core_type<tc>, window_params = [{transform_indices = @transform_0, window_bounds = array<i64: 40, 16>}, {transform_indices = @transform_1, window_bounds = array<i64: 40, 1>}, {transform_indices = @transform_2, window_bounds = array<i64: 1, 1>}]} {
    %c0_i32 = arith.constant 0 : i32
    %0 = arith.cmpi eq, %arg1, %c0_i32 : i32
    %1 = arith.extui %0 : i1 to i32
    %c0_i32_0 = arith.constant 0 : i32
    %2 = arith.cmpi ne, %1, %c0_i32_0 : i32
    scf.if %2 {
      %cst_21 = arith.constant -1.000000e+30 : f32
      %37 = vector.broadcast %cst_21 : f32 to vector<40x1xf32>
      %c0_22 = arith.constant 0 : index
      %c0_23 = arith.constant 0 : index
      %38 = vector.load %arg5[%c0_22, %c0_23] : memref<40x1xf32, #tpu.memory_space<vmem>>, vector<40x1xf32>
      tpu.vector_store %arg5[%c0_22, %c0_23], %37 {strides = array<i32>} : memref<40x1xf32, #tpu.memory_space<vmem>>, vector<40x1xf32>,
      %cst_24 = arith.constant 0.000000e+00 : f32
      %39 = vector.broadcast %cst_24 : f32 to vector<40x1xf32>
      %c0_25 = arith.constant 0 : index
      %c0_26 = arith.constant 0 : index
      %40 = vector.load %arg6[%c0_25, %c0_26] : memref<40x1xf32, #tpu.memory_space<vmem>>, vector<40x1xf32>
      tpu.vector_store %arg6[%c0_25, %c0_26], %39 {strides = array<i32>} : memref<40x1xf32, #tpu.memory_space<vmem>>, vector<40x1xf32>,
      %cst_27 = arith.constant 0.000000e+00 : f32
      %41 = vector.broadcast %cst_27 : f32 to vector<40x1xf32>
      %c0_28 = arith.constant 0 : index
      %c0_29 = arith.constant 0 : index
      %42 = vector.load %arg7[%c0_28, %c0_29] : memref<40x1xf32, #tpu.memory_space<vmem>>, vector<40x1xf32>
      tpu.vector_store %arg7[%c0_28, %c0_29], %41 {strides = array<i32>} : memref<40x1xf32, #tpu.memory_space<vmem>>, vector<40x1xf32>,
    } else {
    }
    %c0 = arith.constant 0 : index
    %c0_1 = arith.constant 0 : index
    %3 = vector.load %arg2[%c0, %c0_1] : memref<40x16xf32, #tpu.memory_space<vmem>>, vector<40x16xf32>
    %c0_2 = arith.constant 0 : index
    %c0_3 = arith.constant 0 : index
    %4 = vector.load %arg3[%c0_2, %c0_3] : memref<40x1xi32, #tpu.memory_space<vmem>>, vector<40x1xi32>
    %5 = tpu.iota {dimensions = array<i32: 1>} : vector<40x16xi32>
    %c16_i32 = arith.constant 16 : i32
    %6 = arith.muli %arg1, %c16_i32 : i32
    %7 = vector.broadcast %6 : i32 to vector<40x1xi32>
    %8 = arith.subi %4, %7 : vector<40x1xi32>
    %9 = vector.broadcast %8 : vector<40x1xi32> to vector<40x16xi32>
    %10 = arith.cmpi eq, %5, %9 : vector<40x16xi32>
    %c0_4 = arith.constant 0 : index
    %c0_5 = arith.constant 0 : index
    %11 = vector.load %arg7[%c0_4, %c0_5] : memref<40x1xf32, #tpu.memory_space<vmem>>, vector<40x1xf32>
    %cst = arith.constant 0.000000e+00 : f32
    %12 = vector.broadcast %cst : f32 to vector<40x16xf32>
    %13 = arith.select %10, %3, %12 : vector<40x16xi1>, vector<40x16xf32>
    %cst_6 = arith.constant dense<0.000000e+00> : vector<40xf32>
    %14 = vector.multi_reduction <add>, %13, %cst_6 [1] : vector<40x16xf32> to vector<40xf32>
    %15 = vector.shape_cast %14 : vector<40xf32> to vector<40x1xf32>
    %16 = arith.addf %11, %15 : vector<40x1xf32>
    %c0_7 = arith.constant 0 : index
    %c0_8 = arith.constant 0 : index
    %17 = vector.load %arg7[%c0_7, %c0_8] : memref<40x1xf32, #tpu.memory_space<vmem>>, vector<40x1xf32>
    tpu.vector_store %arg7[%c0_7, %c0_8], %16 {strides = array<i32>} : memref<40x1xf32, #tpu.memory_space<vmem>>, vector<40x1xf32>,
    %c0_9 = arith.constant 0 : index
    %c0_10 = arith.constant 0 : index
    %18 = vector.load %arg5[%c0_9, %c0_10] : memref<40x1xf32, #tpu.memory_space<vmem>>, vector<40x1xf32>
    %cst_11 = arith.constant dense<0xFF800000> : vector<40xf32>
    %19 = vector.multi_reduction <maximumf>, %3, %cst_11 [1] : vector<40x16xf32> to vector<40xf32>
    %20 = vector.shape_cast %19 : vector<40xf32> to vector<40x1xf32>
    %21 = arith.maximumf %18, %20 : vector<40x1xf32>
    %22 = arith.subf %18, %21 : vector<40x1xf32>
    %23 = math.exp %22 : vector<40x1xf32>
    %c0_12 = arith.constant 0 : index
    %c0_13 = arith.constant 0 : index
    %24 = vector.load %arg6[%c0_12, %c0_13] : memref<40x1xf32, #tpu.memory_space<vmem>>, vector<40x1xf32>
    %25 = arith.mulf %23, %24 : vector<40x1xf32>
    %26 = vector.broadcast %21 : vector<40x1xf32> to vector<40x16xf32>
    %27 = arith.subf %3, %26 : vector<40x16xf32>
    %28 = math.exp %27 : vector<40x16xf32>
    %cst_14 = arith.constant dense<0.000000e+00> : vector<40xf32>
    %29 = vector.multi_reduction <add>, %28, %cst_14 [1] : vector<40x16xf32> to vector<40xf32>
    %30 = vector.shape_cast %29 : vector<40xf32> to vector<40x1xf32>
    %31 = arith.addf %25, %30 : vector<40x1xf32>
    %c0_15 = arith.constant 0 : index
    %c0_16 = arith.constant 0 : index
    %32 = vector.load %arg6[%c0_15, %c0_16] : memref<40x1xf32, #tpu.memory_space<vmem>>, vector<40x1xf32>
    tpu.vector_store %arg6[%c0_15, %c0_16], %31 {strides = array<i32>} : memref<40x1xf32, #tpu.memory_space<vmem>>, vector<40x1xf32>,
    %c0_17 = arith.constant 0 : index
    %c0_18 = arith.constant 0 : index
    %33 = vector.load %arg5[%c0_17, %c0_18] : memref<40x1xf32, #tpu.memory_space<vmem>>, vector<40x1xf32>
    tpu.vector_store %arg5[%c0_17, %c0_18], %21 {strides = array<i32>} : memref<40x1xf32, #tpu.memory_space<vmem>>, vector<40x1xf32>,
    %c0_i32_19 = arith.constant 0 : i32
    %34 = arith.cmpi eq, %arg1, %c0_i32_19 : i32
    %35 = arith.extui %34 : i1 to i32
    %c0_i32_20 = arith.constant 0 : i32
    %36 = arith.cmpi ne, %35, %c0_i32_20 : i32
    scf.if %36 {
      %c0_21 = arith.constant 0 : index
      %c0_22 = arith.constant 0 : index
      %37 = vector.load %arg6[%c0_21, %c0_22] : memref<40x1xf32, #tpu.memory_space<vmem>>, vector<40x1xf32>
      %38 = math.log %37 : vector<40x1xf32>
      %c0_23 = arith.constant 0 : index
      %c0_24 = arith.constant 0 : index
      %39 = vector.load %arg5[%c0_23, %c0_24] : memref<40x1xf32, #tpu.memory_space<vmem>>, vector<40x1xf32>
      %40 = arith.addf %38, %39 : vector<40x1xf32>
      %c0_25 = arith.constant 0 : index
      %c0_26 = arith.constant 0 : index
      %41 = vector.load %arg7[%c0_25, %c0_26] : memref<40x1xf32, #tpu.memory_space<vmem>>, vector<40x1xf32>
      %42 = arith.subf %40, %41 : vector<40x1xf32>
      %43 = vector.shape_cast %42 : vector<40x1xf32> to vector<1x40x1xf32>
      %cst_27 = arith.constant dense<0.000000e+00> : vector<1xf32>
      %44 = vector.multi_reduction <add>, %43, %cst_27 [1, 2] : vector<1x40x1xf32> to vector<1xf32>
      %45 = vector.shape_cast %44 : vector<1xf32> to vector<1x1x1xf32>
      %46 = vector.extract %45[0, 0, 0] : f32 from vector<1x1x1xf32>
      %c0_28 = arith.constant 0 : index
      %c0_29 = arith.constant 0 : index
      %47 = memref.load %arg4[%c0_28, %c0_29] : memref<1x1xf32, #tpu.memory_space<smem>>
      memref.store %46, %arg4[%c0_28, %c0_29] : memref<1x1xf32, #tpu.memory_space<smem>>
    } else {
    }
    return
  }
  func.func @transform_0(%arg0: i32, %arg1: i32) -> (i32, i32) {
    %c0_i32 = arith.constant 0 : i32
    return %arg0, %arg1 : i32, i32
  }
  func.func @transform_1(%arg0: i32, %arg1: i32) -> (i32, i32) {
    %c0_i32 = arith.constant 0 : i32
    %c0_i32_0 = arith.constant 0 : i32
    return %arg0, %c0_i32 : i32, i32
  }
  func.func @transform_2(%arg0: i32, %arg1: i32) -> (i32, i32) {
    %c0_i32 = arith.constant 0 : i32
    %c0_i32_0 = arith.constant 0 : i32
    return %arg0, %c0_i32 : i32, i32
  }
}

</mosaic_0001>

<llo_original>
// kernel: tpu_custom_call.1
$region0: #{tpu_custom_call.1}
  #allocation0 [shape = 'u32[]', space=smem, size = 0x4, offset = 0x4, fixed_abs, tag = 'smem constant byte address 0x4 - core index']
  #allocation1 [shape = 'u32[144,128]{1,0:T(1,128)}', space=vmem, size = 0x12000, scoped, tag = 'internal scratch']
  #allocation2 [shape = 'f32[40,1]{1,0:T(8,128)}', space=vmem, size = 0x5000, scoped, tag = 'scratch operand']
  #allocation3 [shape = 'f32[40,1]{1,0:T(8,128)}', space=vmem, size = 0x5000, scoped, tag = 'scratch operand']
  #allocation4 [shape = 'f32[40,1]{1,0:T(8,128)}', space=vmem, size = 0x5000, scoped, tag = 'scratch operand']
  %s0 = inlined_call_operand.vmem [shape: f32[40,16], index: 0, kind: input, shape index: {}]
  %s1 = inlined_call_operand.vmem [shape: s32[40,1], index: 1, kind: input, shape index: {}]
  %s2 = inlined_call_operand.hbm [shape: f32[1,1], index: 2, kind: output, shape index: {}]
  %s3 = sld [smem:[#allocation0]]
  $region26: #{tpu_custom_call.1} parent=0
    _
  %s5 = ssub.s32 1, %s3
  %s6 = scalar_select 0, %s5, %s3
  $region1: #{tpu_custom_call.1} parent=0
    #allocation5 [shape = 'u8[512]{0}', space=smem, size = 0x200, scoped, tag = 'output window, operand 0, single buffered']
    #allocation6 [shape = 's32[1]{0}', space=sflag, size = 0x4, scoped, tag = 'scoped memory for tpu_custom_call.1']
    %7 = vsyncpa [#allocation6], 0
    // Predicated region
    $region2: #{tpu_custom_call.1} parent=1 // pred_check
      _
    $region3: #{tpu_custom_call.1} parent=1 // pred_check_branch
      %9 = sbr.rel (0) target = $region5
    $region4: #{tpu_custom_call.1} parent=1 // pred_region
      _
    $region5: #{tpu_custom_call.1} parent=1 // pred_fallthru
      _
    // Predicated region
    $region6: #{tpu_custom_call.1} parent=1 // pred_check
      _
    $region7: #{tpu_custom_call.1} parent=1 // pred_check_branch
      %11 = sbr.rel (0) target = $region9
    $region8: #{tpu_custom_call.1} parent=1 // pred_region
      _
    $region9: #{tpu_custom_call.1} parent=1 // pred_fallthru
      _
    %p12 = scmp.eq.s32.totalorder 0, 0
    // Predicated region
    $region10: #{tpu_custom_call.1} parent=1 // pred_check
      %p13 = pneg %p12
    $region11: #{tpu_custom_call.1} parent=1 // pred_check_branch
      %15 = sbr.rel (%p13) target = $region13
    $region12: #{tpu_custom_call.1} parent=1 // pred_region
      %vm16 = vcmask 7168
      %17 = vst.msk [vmem:[#allocation2] sm:$0xff] %vm16, -1e+30
      %18 = vst.msk [vmem:[#allocation2 + $0x8] sm:$0xff] %vm16, -1e+30
      %19 = vst.msk [vmem:[#allocation2 + $0x10] sm:$0xff] %vm16, -1e+30
      %20 = vst.msk [vmem:[#allocation2 + $0x18] sm:$0xff] %vm16, -1e+30
      %21 = vst.msk [vmem:[#allocation2 + $0x20] sm:$0xff] %vm16, -1e+30
      %22 = vst.msk [vmem:[#allocation3] sm:$0xff] %vm16, 0.0
      %23 = vst.msk [vmem:[#allocation3 + $0x8] sm:$0xff] %vm16, 0.0
      %24 = vst.msk [vmem:[#allocation3 + $0x10] sm:$0xff] %vm16, 0.0
      %25 = vst.msk [vmem:[#allocation3 + $0x18] sm:$0xff] %vm16, 0.0
      %26 = vst.msk [vmem:[#allocation3 + $0x20] sm:$0xff] %vm16, 0.0
      %27 = vst.msk [vmem:[#allocation4] sm:$0xff] %vm16, 0.0
      %28 = vst.msk [vmem:[#allocation4 + $0x8] sm:$0xff] %vm16, 0.0
      %29 = vst.msk [vmem:[#allocation4 + $0x10] sm:$0xff] %vm16, 0.0
      %30 = vst.msk [vmem:[#allocation4 + $0x18] sm:$0xff] %vm16, 0.0
      %31 = vst.msk [vmem:[#allocation4 + $0x20] sm:$0xff] %vm16, 0.0
    $region13: #{tpu_custom_call.1} parent=1 // pred_fallthru
      _
    %v32 = vld [vmem:[%s0] sm:$0xff]
    %v33 = vld [vmem:[%s0 + $0x8] sm:$0xff]
    %v34 = vld [vmem:[%s0 + $0x10] sm:$0xff]
    %v35 = vld [vmem:[%s0 + $0x18] sm:$0xff]
    %v36 = vld [vmem:[%s0 + $0x20] sm:$0xff]
    %v37 = vld [vmem:[%s1] sm:$0xff]
    %v38 = vld [vmem:[%s1 + $0x8] sm:$0xff]
    %v39 = vld [vmem:[%s1 + $0x10] sm:$0xff]
    %v40 = vld [vmem:[%s1 + $0x18] sm:$0xff]
    %v41 = vld [vmem:[%s1 + $0x20] sm:$0xff]
    %v42 = vlaneseq
    %v43 = vand.u32 %v42, 127
    %s44 = smul.u32 0, 16
    %v45 = vstv %s44
    %v46 = vsub.s32 %v37, %v45
    %v47 = vsub.s32 %v38, %v45
    %v48 = vsub.s32 %v39, %v45
    %v49 = vsub.s32 %v40, %v45
    %v50 = vsub.s32 %v41, %v45
    %51 = vset.pattern.permute.xlu0 0
    %52 = vperm.xlu0 %51, %v46
    %v53 = vpop.permute.xlu0 %52
    %54 = vset.pattern.permute.xlu0 0
    %55 = vperm.xlu0 %54, %v47
    %v56 = vpop.permute.xlu0 %55
    %57 = vset.pattern.permute.xlu0 0
    %58 = vperm.xlu0 %57, %v48
    %v59 = vpop.permute.xlu0 %58
    %60 = vset.pattern.permute.xlu0 0
    %61 = vperm.xlu0 %60, %v49
    %v62 = vpop.permute.xlu0 %61
    %63 = vset.pattern.permute.xlu0 0
    %64 = vperm.xlu0 %63, %v50
    %v65 = vpop.permute.xlu0 %64
    %vm66 = vcmp.eq.s32.totalorder %v43, %v53
    %vm67 = vcmp.eq.s32.totalorder %v43, %v56
    %vm68 = vcmp.eq.s32.totalorder %v43, %v59
    %vm69 = vcmp.eq.s32.totalorder %v43, %v62
    %vm70 = vcmp.eq.s32.totalorder %v43, %v65
    %v71 = vld [vmem:[#allocation4] sm:$0xff]
    %v72 = vld [vmem:[#allocation4 + $0x8] sm:$0xff]
    %v73 = vld [vmem:[#allocation4 + $0x10] sm:$0xff]
    %v74 = vld [vmem:[#allocation4 + $0x18] sm:$0xff]
    %v75 = vld [vmem:[#allocation4 + $0x20] sm:$0xff]
    %v76 = vsel %vm66, %v32, 0.0
    %v77 = vsel %vm67, %v33, 0.0
    %v78 = vsel %vm68, %v34, 0.0
    %v79 = vsel %vm69, %v35, 0.0
    %v80 = vsel %vm70, %v36, 0.0
    %vm81 = vcmask 130048
    %v82 = vsel %vm81, %v76, 0.0
    %83 = vadd.xlane.f32.xlu0 %v82
    %v84 = vpop.xlane.xlu0 %83
    %v85 = vsel %vm81, %v77, 0.0
    %86 = vadd.xlane.f32.xlu0 %v85
    %v87 = vpop.xlane.xlu0 %86
    %v88 = vsel %vm81, %v78, 0.0
    %89 = vadd.xlane.f32.xlu0 %v88
    %v90 = vpop.xlane.xlu0 %89
    %v91 = vsel %vm81, %v79, 0.0
    %92 = vadd.xlane.f32.xlu0 %v91
    %v93 = vpop.xlane.xlu0 %92
    %v94 = vsel %vm81, %v80, 0.0
    %95 = vadd.xlane.f32.xlu0 %v94
    %v96 = vpop.xlane.xlu0 %95
    %v97 = vadd.f32 %v71, %v84
    %v98 = vadd.f32 %v72, %v87
    %v99 = vadd.f32 %v73, %v90
    %v100 = vadd.f32 %v74, %v93
    %v101 = vadd.f32 %v75, %v96
    %vm102 = vcmask 7168
    %103 = vst.msk [vmem:[#allocation4] sm:$0xff] %vm102, %v97
    %104 = vst.msk [vmem:[#allocation4 + $0x8] sm:$0xff] %vm102, %v98
    %105 = vst.msk [vmem:[#allocation4 + $0x10] sm:$0xff] %vm102, %v99
    %106 = vst.msk [vmem:[#allocation4 + $0x18] sm:$0xff] %vm102, %v100
    %107 = vst.msk [vmem:[#allocation4 + $0x20] sm:$0xff] %vm102, %v101
    %v108 = vld [vmem:[#allocation2] sm:$0xff]
    %v109 = vld [vmem:[#allocation2 + $0x8] sm:$0xff]
    %v110 = vld [vmem:[#allocation2 + $0x10] sm:$0xff]
    %v111 = vld [vmem:[#allocation2 + $0x18] sm:$0xff]
    %v112 = vld [vmem:[#allocation2 + $0x20] sm:$0xff]
    %v113 = vsel %vm81, %v32, -inf
    %114 = vmax.xlane.f32.xlu0 %v113
    %v115 = vpop.xlane.xlu0 %114
    %v116 = vsel %vm81, %v33, -inf
    %117 = vmax.xlane.f32.xlu0 %v116
    %v118 = vpop.xlane.xlu0 %117
    %v119 = vsel %vm81, %v34, -inf
    %120 = vmax.xlane.f32.xlu0 %v119
    %v121 = vpop.xlane.xlu0 %120
    %v122 = vsel %vm81, %v35, -inf
    %123 = vmax.xlane.f32.xlu0 %v122
    %v124 = vpop.xlane.xlu0 %123
    %v125 = vsel %vm81, %v36, -inf
    %126 = vmax.xlane.f32.xlu0 %v125
    %v127 = vpop.xlane.xlu0 %126
    %v128 = vmax.f32 %v108, %v115
    %v129 = vmax.f32 %v109, %v118
    %v130 = vmax.f32 %v110, %v121
    %v131 = vmax.f32 %v111, %v124
    %v132 = vmax.f32 %v112, %v127
    %v133 = vsub.f32 %v108, %v128
    %v134 = vsub.f32 %v109, %v129
    %v135 = vsub.f32 %v110, %v130
    %v136 = vsub.f32 %v111, %v131
    %v137 = vsub.f32 %v112, %v132
    %v138 = vmul.f32 %v133, 1.442695
    %v139 = vpow.pop %v138
    %v140 = vmul.f32 %v134, 1.442695
    %v141 = vpow.pop %v140
    %v142 = vmul.f32 %v135, 1.442695
    %v143 = vpow.pop %v142
    %v144 = vmul.f32 %v136, 1.442695
    %v145 = vpow.pop %v144
    %v146 = vmul.f32 %v137, 1.442695
    %v147 = vpow.pop %v146
    %v148 = vld [vmem:[#allocation3] sm:$0xff]
    %v149 = vld [vmem:[#allocation3 + $0x8] sm:$0xff]
    %v150 = vld [vmem:[#allocation3 + $0x10] sm:$0xff]
    %v151 = vld [vmem:[#allocation3 + $0x18] sm:$0xff]
    %v152 = vld [vmem:[#allocation3 + $0x20] sm:$0xff]
    %v153 = vmul.f32 %v139, %v148
    %v154 = vmul.f32 %v141, %v149
    %v155 = vmul.f32 %v143, %v150
    %v156 = vmul.f32 %v145, %v151
    %v157 = vmul.f32 %v147, %v152
    %159 = vset.pattern.permute.xlu0 0
    %160 = vperm.xlu0 %159, %v128
    %v161 = vpop.permute.xlu0 %160
    %164 = vset.pattern.permute.xlu0 0
    %165 = vperm.xlu0 %164, %v129
    %v166 = vpop.permute.xlu0 %165
    %169 = vset.pattern.permute.xlu0 0
    %170 = vperm.xlu0 %169, %v130
    %v171 = vpop.permute.xlu0 %170
    %174 = vset.pattern.permute.xlu0 0
    %175 = vperm.xlu0 %174, %v131
    %v176 = vpop.permute.xlu0 %175
    %179 = vset.pattern.permute.xlu0 0
    %180 = vperm.xlu0 %179, %v132
    %v181 = vpop.permute.xlu0 %180
    %v183 = vsub.f32 %v32, %v161
    %v184 = vsub.f32 %v33, %v166
    %v185 = vsub.f32 %v34, %v171
    %v186 = vsub.f32 %v35, %v176
    %v187 = vsub.f32 %v36, %v181
    %v188 = vmul.f32 %v183, 1.442695
    %v189 = vpow.pop %v188
    %v190 = vmul.f32 %v184, 1.442695
    %v191 = vpow.pop %v190
    %v192 = vmul.f32 %v185, 1.442695
    %v193 = vpow.pop %v192
    %v194 = vmul.f32 %v186, 1.442695
    %v195 = vpow.pop %v194
    %v196 = vmul.f32 %v187, 1.442695
    %v197 = vpow.pop %v196
    %v198 = vsel %vm81, %v189, 0.0
    %199 = vadd.xlane.f32.xlu0 %v198
    %v200 = vpop.xlane.xlu0 %199
    %v201 = vsel %vm81, %v191, 0.0
    %202 = vadd.xlane.f32.xlu0 %v201
    %v203 = vpop.xlane.xlu0 %202
    %v204 = vsel %vm81, %v193, 0.0
    %205 = vadd.xlane.f32.xlu0 %v204
    %v206 = vpop.xlane.xlu0 %205
    %v207 = vsel %vm81, %v195, 0.0
    %208 = vadd.xlane.f32.xlu0 %v207
    %v209 = vpop.xlane.xlu0 %208
    %v210 = vsel %vm81, %v197, 0.0
    %211 = vadd.xlane.f32.xlu0 %v210
    %v212 = vpop.xlane.xlu0 %211
    %v213 = vadd.f32 %v153, %v200
    %v214 = vadd.f32 %v154, %v203
    %v215 = vadd.f32 %v155, %v206
    %v216 = vadd.f32 %v156, %v209
    %v217 = vadd.f32 %v157, %v212
    %218 = vst.msk [vmem:[#allocation3] sm:$0xff] %vm102, %v213
    %219 = vst.msk [vmem:[#allocation3 + $0x8] sm:$0xff] %vm102, %v214
    %220 = vst.msk [vmem:[#allocation3 + $0x10] sm:$0xff] %vm102, %v215
    %221 = vst.msk [vmem:[#allocation3 + $0x18] sm:$0xff] %vm102, %v216
    %222 = vst.msk [vmem:[#allocation3 + $0x20] sm:$0xff] %vm102, %v217
    %223 = vst.msk [vmem:[#allocation2] sm:$0xff] %vm102, %v128
    %224 = vst.msk [vmem:[#allocation2 + $0x8] sm:$0xff] %vm102, %v129
    %225 = vst.msk [vmem:[#allocation2 + $0x10] sm:$0xff] %vm102, %v130
    %226 = vst.msk [vmem:[#allocation2 + $0x18] sm:$0xff] %vm102, %v131
    %227 = vst.msk [vmem:[#allocation2 + $0x20] sm:$0xff] %vm102, %v132
    // Predicated region
    $region14: #{tpu_custom_call.1} parent=1 // pred_check
      %p228 = pneg %p12
    $region15: #{tpu_custom_call.1} parent=1 // pred_check_branch
      %230 = sbr.rel (%p228) target = $region17
    $region16: #{tpu_custom_call.1} parent=1 // pred_region
      %v231 = vld [vmem:[#allocation3] sm:$0xff]
      %v232 = vld [vmem:[#allocation3 + $0x8] sm:$0xff]
      %v233 = vld [vmem:[#allocation3 + $0x10] sm:$0xff]
      %v234 = vld [vmem:[#allocation3 + $0x18] sm:$0xff]
      %v235 = vld [vmem:[#allocation3 + $0x20] sm:$0xff]
      %v236 = vlog2.pop %v231
      %v237 = vmul.f32 %v236, 0.6931472
      %v238 = vlog2.pop %v232
      %v239 = vmul.f32 %v238, 0.6931472
      %v240 = vlog2.pop %v233
      %v241 = vmul.f32 %v240, 0.6931472
      %v242 = vlog2.pop %v234
      %v243 = vmul.f32 %v242, 0.6931472
      %v244 = vlog2.pop %v235
      %v245 = vmul.f32 %v244, 0.6931472
      %v246 = vld [vmem:[#allocation2] sm:$0xff]
      %v247 = vld [vmem:[#allocation2 + $0x8] sm:$0xff]
      %v248 = vld [vmem:[#allocation2 + $0x10] sm:$0xff]
      %v249 = vld [vmem:[#allocation2 + $0x18] sm:$0xff]
      %v250 = vld [vmem:[#allocation2 + $0x20] sm:$0xff]
      %v251 = vadd.f32 %v237, %v246
      %v252 = vadd.f32 %v239, %v247
      %v253 = vadd.f32 %v241, %v248
      %v254 = vadd.f32 %v243, %v249
      %v255 = vadd.f32 %v245, %v250
      %v256 = vld [vmem:[#allocation4] sm:$0xff]
      %v257 = vld [vmem:[#allocation4 + $0x8] sm:$0xff]
      %v258 = vld [vmem:[#allocation4 + $0x10] sm:$0xff]
      %v259 = vld [vmem:[#allocation4 + $0x18] sm:$0xff]
      %v260 = vld [vmem:[#allocation4 + $0x20] sm:$0xff]
      %v261 = vsub.f32 %v251, %v256
      %v262 = vsub.f32 %v252, %v257
      %v263 = vsub.f32 %v253, %v258
      %v264 = vsub.f32 %v254, %v259
      %v265 = vsub.f32 %v255, %v260
      %v266 = vsel %vm102, %v261, 0.0
      %v267 = vsel %vm102, %v262, 0.0
      %v268 = vadd.f32 %v266, %v267
      %v269 = vsel %vm102, %v263, 0.0
      %v270 = vadd.f32 %v268, %v269
      %v271 = vsel %vm102, %v264, 0.0
      %v272 = vadd.f32 %v270, %v271
      %v273 = vsel %vm102, %v265, 0.0
      %v274 = vadd.f32 %v272, %v273
      %275 = vadd.xlane.f32.xlu0 %v274
      %v276 = vpop.xlane.xlu0 %275
      %v277 = vrot.slane %v276, 4
      %v278 = vadd.f32 %v276, %v277
      %v279 = vrot.slane %v278, 2
      %v280 = vadd.f32 %v278, %v279
      %v281 = vrot.slane %v280, 1
      %v282 = vadd.f32 %v280, %v281
      %s283 = vtos %v282
      %s284 = scalar_lea.smem [#allocation5], 0
      %285 = sst [smem:[%s284]] %s283
    $region17: #{tpu_custom_call.1} parent=1 // pred_fallthru
      _
    // Predicated region
    $region18: #{tpu_custom_call.1} parent=1 // pred_check
      _
    $region19: #{tpu_custom_call.1} parent=1 // pred_check_branch
      %287 = sbr.rel (0) target = $region21
    $region20: #{tpu_custom_call.1} parent=1 // pred_region
      %s289 = ssub.s32 16, 16
      %290 = vsyncadd [#allocation6], %s289
      %293 = dma.smem_to_hbm [#allocation5], 16, %s2, [#allocation6]
    $region21: #{tpu_custom_call.1} parent=1 // pred_fallthru
      _
    // Predicated region
    $region22: #{tpu_custom_call.1} parent=1 // pred_check
      _
    $region23: #{tpu_custom_call.1} parent=1 // pred_check_branch
      %295 = sbr.rel (0) target = $region25
    $region24: #{tpu_custom_call.1} parent=1 // pred_region
      %296 = dma.done [#allocation6], 16
    $region25: #{tpu_custom_call.1} parent=1 // pred_fallthru
      _
    %297 = sfence
    %298 = vsyncpa [#allocation6], 1

</llo_original>
